<compile_context>
chip_gen: v5e
topology: v5e:2x2
jax: 0.10.0
libtpu: 0.0.40
codegen_flags: <defaults>
</compile_context>

<pallas_src>
import jax
import jax.numpy as jnp
from jax.experimental import pallas as pl
from jax.experimental.pallas import tpu as pltpu

EPS = 1e-6  # F.pairwise_distance default eps (added to the difference)


def aton_kernel(x_ref, w_ref, w1_ref, b1_ref, w2_ref, b2_ref, out_ref):
    f32 = jnp.float32
    _, TB, F = x_ref.shape
    L = w_ref.shape[1]

    # Shared Linear(n_feature -> n_linear, bias=False) on all four streams at
    # once: [4*TB, F] @ [F, L]  (single MXU push, M = 4*TB).
    x = x_ref[...].reshape(4 * TB, F)
    emb = jnp.dot(x, w_ref[...], preferred_element_type=f32)    # [4*TB, L]

    n = emb[0 * TB:1 * TB]   # negative
    a = emb[1 * TB:2 * TB]   # anchor
    p = emb[2 * TB:3 * TB]   # positive
    m = emb[3 * TB:4 * TB]   # nanom

    # attn_net( cat([negative, anchor, positive, nanom], dim=1) )
    cat = jnp.concatenate([n, a, p, m], axis=1)                 # [TB, 4L]
    h = jnp.dot(cat, w1_ref[...], preferred_element_type=f32) + b1_ref[...]
    h = jnp.maximum(h, 0.0)
    logits = jnp.dot(h, w2_ref[...], preferred_element_type=f32) + b2_ref[...]

    # softmax over the feature dim (dim=1); exact divide to hold tolerance.
    mx = jnp.max(logits, axis=1, keepdims=True)
    e = jnp.exp(logits - mx)
    attn = e / jnp.sum(e, axis=1, keepdims=True)

    # (1 - attn) residuals and pairwise distances: torch ||x - y + eps||_2.
    one_m = 1.0 - attn

    def pdist(u, v):
        d = u - v + EPS
        return jnp.sqrt(jnp.sum(d * d, axis=1, keepdims=True))

    dis1 = pdist(one_m * n, one_m * a)
    dis2 = pdist(one_m * p, one_m * a)
    dis3 = pdist(one_m * n, one_m * m)
    dis = (jnp.abs(dis1 - dis2) + jnp.abs(dis1 - dis3)
           + jnp.abs(dis3 - dis2))                              # [TB, 1]

    # Single lane-dense output slab: [ea | ep | en | enn | attn | dis*ones(L)].
    out_ref[...] = jnp.concatenate(
        [a * attn, p * attn, n * attn, m * attn, attn,
         jnp.broadcast_to(dis, (TB, L))], axis=1)


def aton_forward(anchor, positive, negative, nanom, params):
    B, F = anchor.shape
    L = params["W"].shape[1]
    H = params["W1"].shape[1]

    # Batch tile: whole batch when small, else 512 rows (multiple of 8).
    # TODO(synk): per-generation tile sweep + explicit vmem_limit_bytes for
    # very large B (v7x has 64 MiB physical VMEM vs 128 MiB on v5e/v6e).
    tile_b = B if B <= 512 else 512

    # Stack order matches torch.cat([negative, anchor, positive, nanom], dim=1)
    x = jnp.stack([negative, anchor, positive, nanom], axis=0)  # [4, B, F]

    grid_spec = pltpu.PrefetchScalarGridSpec(
        num_scalar_prefetch=0,
        grid=(pl.cdiv(B, tile_b),),
        in_specs=[
            pl.BlockSpec((4, tile_b, F), lambda i: (0, i, 0)),   # stacked inputs
            pl.BlockSpec((F, L), lambda i: (0, 0)),              # W (resident)
            pl.BlockSpec((4 * L, H), lambda i: (0, 0)),          # W1 (packed)
            pl.BlockSpec((1, H), lambda i: (0, 0)),              # b1
            pl.BlockSpec((H, L), lambda i: (0, 0)),              # W2
            pl.BlockSpec((1, L), lambda i: (0, 0)),              # b2
        ],
        out_specs=pl.BlockSpec((tile_b, 6 * L), lambda i: (i, 0)),
    )

    out = pl.pallas_call(
        aton_kernel,
        out_shape=jax.ShapeDtypeStruct((B, 6 * L), jnp.float32),
        grid_spec=grid_spec,
        compiler_params=pltpu.CompilerParams(
            dimension_semantics=("parallel",)),
    )(x, params["W"], params["W1"], params["b1"], params["W2"], params["b2"])

    ea = out[:, 0 * L:1 * L]
    ep = out[:, 1 * L:2 * L]
    en = out[:, 2 * L:3 * L]
    enn = out[:, 3 * L:4 * L]
    attn = out[:, 4 * L:5 * L]
    dis = out[:, 5 * L]          # dis was broadcast across its L-column block
    return ea, ep, en, enn, attn, dis


def ref_forward(anchor, positive, negative, nanom, params):
    """Pure-JAX reference mirroring the PyTorch module."""
    W = params["W"]
    a, p, n, m = anchor @ W, positive @ W, negative @ W, nanom @ W
    cat = jnp.concatenate([n, a, p, m], axis=1)
    h = jnp.maximum(cat @ params["W1"] + params["b1"], 0.0)
    attn = jax.nn.softmax(h @ params["W2"] + params["b2"], axis=1)
    ea, ep, en, enn = a * attn, p * attn, n * attn, m * attn
    one_m = 1.0 - attn

    def pdist(x, y):
        return jnp.sqrt(jnp.sum((x - y + EPS) ** 2, axis=1))

    dis1 = pdist(one_m * n, one_m * a)
    dis2 = pdist(one_m * p, one_m * a)
    dis3 = pdist(one_m * n, one_m * m)
    dis = jnp.abs(dis1 - dis2) + jnp.abs(dis1 - dis3) + jnp.abs(dis3 - dis2)
    return ea, ep, en, enn, attn, dis


if __name__ == "__main__":
    B, F, L, H = 8, 32, 16, 32  # batch, n_feature, n_linear, attn hidden

    key = jax.random.PRNGKey(0)
    keys = jax.random.split(key, 10)

    anchor = jax.random.normal(keys[0], (B, F), jnp.float32)
    positive = jax.random.normal(keys[1], (B, F), jnp.float32)
    negative = jax.random.normal(keys[2], (B, F), jnp.float32)
    nanom = jax.random.normal(keys[3], (B, F), jnp.float32)

    params = {
        "W":  0.1 * jax.random.normal(keys[4], (F, L), jnp.float32),
        # W1 pre-packed: rows ordered [negative | anchor | positive | nanom]
        # to match the cat order (PyTorch attn_net first Linear weight.T).
        "W1": 0.1 * jax.random.normal(keys[5], (4 * L, H), jnp.float32),
        "b1": 0.1 * jax.random.normal(keys[6], (1, H), jnp.float32),
        "W2": 0.1 * jax.random.normal(keys[7], (H, L), jnp.float32),
        "b2": 0.1 * jax.random.normal(keys[8], (1, L), jnp.float32),
    }

    outs = jax.jit(aton_forward)(anchor, positive, negative, nanom, params)
    outs = jax.block_until_ready(outs)

    refs = ref_forward(anchor, positive, negative, nanom, params)
    names = ["embedded_a", "embedded_p", "embedded_n", "embedded_nn",
             "attn", "dis"]
    for name, o, r in zip(names, outs, refs):
        assert o.shape == r.shape, (name, o.shape, r.shape)
        assert jnp.allclose(o, r, atol=1e-4, rtol=1e-4), name

    print("KERNEL_OK")
</pallas_src>

<mosaic_0001>
module attributes {stable_mosaic.version = 11 : i64} {
  func.func @aton_kernel(%arg0: i32, %arg1: memref<4x8x32xf32, #tpu.memory_space<vmem>>, %arg2: memref<32x16xf32, #tpu.memory_space<vmem>>, %arg3: memref<64x32xf32, #tpu.memory_space<vmem>>, %arg4: memref<1x32xf32, #tpu.memory_space<vmem>>, %arg5: memref<32x16xf32, #tpu.memory_space<vmem>>, %arg6: memref<1x16xf32, #tpu.memory_space<vmem>>, %arg7: memref<8x96xf32, #tpu.memory_space<vmem>>) attributes {dimension_semantics = [#tpu.dimension_semantics<parallel>], iteration_bounds = array<i64: 1>, scalar_prefetch = 0 : i64, scratch_operands = 0 : i64, tpu.core_type = #tpu.core_type<tc>, window_params = [{transform_indices = @transform_0, window_bounds = array<i64: 4, 8, 32>}, {pipeline_mode = #tpu.pipeline_mode<synchronous>, transform_indices = @transform_1, window_bounds = array<i64: 32, 16>}, {pipeline_mode = #tpu.pipeline_mode<synchronous>, transform_indices = @transform_2, window_bounds = array<i64: 64, 32>}, {pipeline_mode = #tpu.pipeline_mode<synchronous>, transform_indices = @transform_3, window_bounds = array<i64: 1, 32>}, {pipeline_mode = #tpu.pipeline_mode<synchronous>, transform_indices = @transform_4, window_bounds = array<i64: 32, 16>}, {pipeline_mode = #tpu.pipeline_mode<synchronous>, transform_indices = @transform_5, window_bounds = array<i64: 1, 16>}, {transform_indices = @transform_6, window_bounds = array<i64: 8, 96>}]} {
    %c0 = arith.constant 0 : index
    %c0_0 = arith.constant 0 : index
    %c0_1 = arith.constant 0 : index
    %0 = vector.load %arg1[%c0, %c0_0, %c0_1] : memref<4x8x32xf32, #tpu.memory_space<vmem>>, vector<4x8x32xf32>
    %1 = vector.shape_cast %0 : vector<4x8x32xf32> to vector<32x32xf32>
    %c0_2 = arith.constant 0 : index
    %c0_3 = arith.constant 0 : index
    %2 = vector.load %arg2[%c0_2, %c0_3] : memref<32x16xf32, #tpu.memory_space<vmem>>, vector<32x16xf32>
    %cst = arith.constant dense<0.000000e+00> : vector<32x16xf32>
    %3 = tpu.matmul %1, %2, %cst {dimension_numbers = #tpu.dot_dimension_numbers<[1], [0], [0], [1], [0, 0, 1, 1], [], []>} : vector<32x32xf32>, vector<32x16xf32>, vector<32x16xf32> -> vector<32x16xf32>
    %4 = vector.extract_strided_slice %3 {offsets = [0, 0], sizes = [8, 16], strides = [1, 1]} : vector<32x16xf32> to vector<8x16xf32>
    %5 = vector.extract_strided_slice %3 {offsets = [8, 0], sizes = [8, 16], strides = [1, 1]} : vector<32x16xf32> to vector<8x16xf32>
    %6 = vector.extract_strided_slice %3 {offsets = [16, 0], sizes = [8, 16], strides = [1, 1]} : vector<32x16xf32> to vector<8x16xf32>
    %7 = vector.extract_strided_slice %3 {offsets = [24, 0], sizes = [8, 16], strides = [1, 1]} : vector<32x16xf32> to vector<8x16xf32>
    %8 = tpu.concatenate %4, %5, %6, %7 in 1 : vector<8x16xf32>, vector<8x16xf32>, vector<8x16xf32>, vector<8x16xf32> -> vector<8x64xf32>
    %c0_4 = arith.constant 0 : index
    %c0_5 = arith.constant 0 : index
    %9 = vector.load %arg3[%c0_4, %c0_5] : memref<64x32xf32, #tpu.memory_space<vmem>>, vector<64x32xf32>
    %cst_6 = arith.constant dense<0.000000e+00> : vector<8x32xf32>
    %10 = tpu.matmul %8, %9, %cst_6 {dimension_numbers = #tpu.dot_dimension_numbers<[1], [0], [0], [1], [0, 0, 1, 1], [], []>} : vector<8x64xf32>, vector<64x32xf32>, vector<8x32xf32> -> vector<8x32xf32>
    %c0_7 = arith.constant 0 : index
    %c0_8 = arith.constant 0 : index
    %11 = vector.load %arg4[%c0_7, %c0_8] : memref<1x32xf32, #tpu.memory_space<vmem>>, vector<1x32xf32>
    %12 = vector.broadcast %11 : vector<1x32xf32> to vector<8x32xf32>
    %13 = arith.addf %10, %12 : vector<8x32xf32>
    %cst_9 = arith.constant 0.000000e+00 : f32
    %14 = vector.broadcast %cst_9 : f32 to vector<8x32xf32>
    %15 = arith.maximumf %13, %14 : vector<8x32xf32>
    %c0_10 = arith.constant 0 : index
    %c0_11 = arith.constant 0 : index
    %16 = vector.load %arg5[%c0_10, %c0_11] : memref<32x16xf32, #tpu.memory_space<vmem>>, vector<32x16xf32>
    %cst_12 = arith.constant dense<0.000000e+00> : vector<8x16xf32>
    %17 = tpu.matmul %15, %16, %cst_12 {dimension_numbers = #tpu.dot_dimension_numbers<[1], [0], [0], [1], [0, 0, 1, 1], [], []>} : vector<8x32xf32>, vector<32x16xf32>, vector<8x16xf32> -> vector<8x16xf32>
    %c0_13 = arith.constant 0 : index
    %c0_14 = arith.constant 0 : index
    %18 = vector.load %arg6[%c0_13, %c0_14] : memref<1x16xf32, #tpu.memory_space<vmem>>, vector<1x16xf32>
    %19 = vector.broadcast %18 : vector<1x16xf32> to vector<8x16xf32>
    %20 = arith.addf %17, %19 : vector<8x16xf32>
    %cst_15 = arith.constant dense<0xFF800000> : vector<8xf32>
    %21 = vector.multi_reduction <maximumf>, %20, %cst_15 [1] : vector<8x16xf32> to vector<8xf32>
    %22 = vector.shape_cast %21 : vector<8xf32> to vector<8x1xf32>
    %23 = vector.broadcast %22 : vector<8x1xf32> to vector<8x16xf32>
    %24 = arith.subf %20, %23 : vector<8x16xf32>
    %25 = math.exp %24 : vector<8x16xf32>
    %cst_16 = arith.constant dense<0.000000e+00> : vector<8xf32>
    %26 = vector.multi_reduction <add>, %25, %cst_16 [1] : vector<8x16xf32> to vector<8xf32>
    %27 = vector.shape_cast %26 : vector<8xf32> to vector<8x1xf32>
    %28 = vector.broadcast %27 : vector<8x1xf32> to vector<8x16xf32>
    %29 = arith.divf %25, %28 : vector<8x16xf32>
    %cst_17 = arith.constant 1.000000e+00 : f32
    %30 = vector.broadcast %cst_17 : f32 to vector<8x16xf32>
    %31 = arith.subf %30, %29 : vector<8x16xf32>
    %32 = arith.mulf %31, %4 : vector<8x16xf32>
    %33 = arith.mulf %31, %5 : vector<8x16xf32>
    %34 = arith.subf %32, %33 : vector<8x16xf32>
    %cst_18 = arith.constant 9.99999997E-7 : f32
    %35 = vector.broadcast %cst_18 : f32 to vector<8x16xf32>
    %36 = arith.addf %34, %35 : vector<8x16xf32>
    %37 = arith.mulf %36, %36 : vector<8x16xf32>
    %cst_19 = arith.constant dense<0.000000e+00> : vector<8xf32>
    %38 = vector.multi_reduction <add>, %37, %cst_19 [1] : vector<8x16xf32> to vector<8xf32>
    %39 = vector.shape_cast %38 : vector<8xf32> to vector<8x1xf32>
    %40 = math.sqrt %39 : vector<8x1xf32>
    %41 = arith.mulf %31, %6 : vector<8x16xf32>
    %42 = arith.mulf %31, %5 : vector<8x16xf32>
    %43 = arith.subf %41, %42 : vector<8x16xf32>
    %cst_20 = arith.constant 9.99999997E-7 : f32
    %44 = vector.broadcast %cst_20 : f32 to vector<8x16xf32>
    %45 = arith.addf %43, %44 : vector<8x16xf32>
    %46 = arith.mulf %45, %45 : vector<8x16xf32>
    %cst_21 = arith.constant dense<0.000000e+00> : vector<8xf32>
    %47 = vector.multi_reduction <add>, %46, %cst_21 [1] : vector<8x16xf32> to vector<8xf32>
    %48 = vector.shape_cast %47 : vector<8xf32> to vector<8x1xf32>
    %49 = math.sqrt %48 : vector<8x1xf32>
    %50 = arith.mulf %31, %4 : vector<8x16xf32>
    %51 = arith.mulf %31, %7 : vector<8x16xf32>
    %52 = arith.subf %50, %51 : vector<8x16xf32>
    %cst_22 = arith.constant 9.99999997E-7 : f32
    %53 = vector.broadcast %cst_22 : f32 to vector<8x16xf32>
    %54 = arith.addf %52, %53 : vector<8x16xf32>
    %55 = arith.mulf %54, %54 : vector<8x16xf32>
    %cst_23 = arith.constant dense<0.000000e+00> : vector<8xf32>
    %56 = vector.multi_reduction <add>, %55, %cst_23 [1] : vector<8x16xf32> to vector<8xf32>
    %57 = vector.shape_cast %56 : vector<8xf32> to vector<8x1xf32>
    %58 = math.sqrt %57 : vector<8x1xf32>
    %59 = arith.subf %40, %49 : vector<8x1xf32>
    %60 = math.absf %59 : vector<8x1xf32>
    %61 = arith.subf %40, %58 : vector<8x1xf32>
    %62 = math.absf %61 : vector<8x1xf32>
    %63 = arith.addf %60, %62 : vector<8x1xf32>
    %64 = arith.subf %58, %49 : vector<8x1xf32>
    %65 = math.absf %64 : vector<8x1xf32>
    %66 = arith.addf %63, %65 : vector<8x1xf32>
    %67 = arith.mulf %5, %29 : vector<8x16xf32>
    %68 = arith.mulf %6, %29 : vector<8x16xf32>
    %69 = arith.mulf %4, %29 : vector<8x16xf32>
    %70 = arith.mulf %7, %29 : vector<8x16xf32>
    %71 = vector.shape_cast %66 : vector<8x1xf32> to vector<8x1xf32>
    %72 = vector.broadcast %71 : vector<8x1xf32> to vector<8x16xf32>
    %73 = tpu.concatenate %67, %68, %69, %70, %29, %72 in 1 : vector<8x16xf32>, vector<8x16xf32>, vector<8x16xf32>, vector<8x16xf32>, vector<8x16xf32>, vector<8x16xf32> -> vector<8x96xf32>
    %c0_24 = arith.constant 0 : index
    %c0_25 = arith.constant 0 : index
    %74 = vector.load %arg7[%c0_24, %c0_25] : memref<8x96xf32, #tpu.memory_space<vmem>>, vector<8x96xf32>
    tpu.vector_store %arg7[%c0_24, %c0_25], %73 {strides = array<i32>} : memref<8x96xf32, #tpu.memory_space<vmem>>, vector<8x96xf32>,
    return
  }
  func.func @transform_0(%arg0: i32) -> (i32, i32, i32) {
    %c0_i32 = arith.constant 0 : i32
    %c0_i32_0 = arith.constant 0 : i32
    %c0_i32_1 = arith.constant 0 : i32
    return %c0_i32, %arg0, %c0_i32_0 : i32, i32, i32
  }
  func.func @transform_1(%arg0: i32) -> (i32, i32) {
    %c0_i32 = arith.constant 0 : i32
    %c0_i32_0 = arith.constant 0 : i32
    %c0_i32_1 = arith.constant 0 : i32
    return %c0_i32, %c0_i32_0 : i32, i32
  }
  func.func @transform_2(%arg0: i32) -> (i32, i32) {
    %c0_i32 = arith.constant 0 : i32
    %c0_i32_0 = arith.constant 0 : i32
    %c0_i32_1 = arith.constant 0 : i32
    return %c0_i32, %c0_i32_0 : i32, i32
  }
  func.func @transform_3(%arg0: i32) -> (i32, i32) {
    %c0_i32 = arith.constant 0 : i32
    %c0_i32_0 = arith.constant 0 : i32
    %c0_i32_1 = arith.constant 0 : i32
    return %c0_i32, %c0_i32_0 : i32, i32
  }
  func.func @transform_4(%arg0: i32) -> (i32, i32) {
    %c0_i32 = arith.constant 0 : i32
    %c0_i32_0 = arith.constant 0 : i32
    %c0_i32_1 = arith.constant 0 : i32
    return %c0_i32, %c0_i32_0 : i32, i32
  }
  func.func @transform_5(%arg0: i32) -> (i32, i32) {
    %c0_i32 = arith.constant 0 : i32
    %c0_i32_0 = arith.constant 0 : i32
    %c0_i32_1 = arith.constant 0 : i32
    return %c0_i32, %c0_i32_0 : i32, i32
  }
  func.func @transform_6(%arg0: i32) -> (i32, i32) {
    %c0_i32 = arith.constant 0 : i32
    %c0_i32_0 = arith.constant 0 : i32
    return %arg0, %c0_i32 : i32, i32
  }
}

</mosaic_0001>

<llo_original>
// kernel: aton_forward.1
$region0: #{aton_forward.1}
  #allocation0 [shape = 'u32[]', space=smem, size = 0x4, offset = 0x4, fixed_abs, tag = 'smem constant byte address 0x4 - core index']
  #allocation1 [shape = 'u32[72,128]{1,0:T(1,128)}', space=vmem, size = 0x9000, scoped, tag = 'internal scratch']
  %s0 = inlined_call_operand.vmem [shape: f32[4,8,32], index: 0, kind: input, shape index: {}]
  %s1 = inlined_call_operand.vmem [shape: f32[32,16], index: 1, kind: input, shape index: {}]
  %s2 = inlined_call_operand.vmem [shape: f32[64,32], index: 2, kind: input, shape index: {}]
  %s3 = inlined_call_operand.vmem [shape: f32[1,32], index: 3, kind: input, shape index: {}]
  %s4 = inlined_call_operand.vmem [shape: f32[32,16], index: 4, kind: input, shape index: {}]
  %s5 = inlined_call_operand.vmem [shape: f32[1,16], index: 5, kind: input, shape index: {}]
  %s6 = inlined_call_operand.vmem [shape: f32[8,96], index: 6, kind: output, shape index: {}]
  %s7 = sld [smem:[#allocation0]]
  $region34: #{aton_forward.1} parent=0
    _
  %s9 = ssub.s32 1, %s7
  %s10 = scalar_select 0, %s9, %s7
  // Predicated region
  $region2: #{aton_forward.1} parent=0 // pred_check
    _
  $region3: #{aton_forward.1} parent=0 // pred_check_branch
    %12 = sbr.rel (0) target = $region5
  $region4: #{aton_forward.1} parent=0 // pred_region
    _
  $region5: #{aton_forward.1} parent=0 // pred_fallthru
    _
  // Predicated region
  $region6: #{aton_forward.1} parent=0 // pred_check
    _
  $region7: #{aton_forward.1} parent=0 // pred_check_branch
    %14 = sbr.rel (0) target = $region9
  $region8: #{aton_forward.1} parent=0 // pred_region
    _
  $region9: #{aton_forward.1} parent=0 // pred_fallthru
    _
  // Predicated region
  $region10: #{aton_forward.1} parent=0 // pred_check
    _
  $region11: #{aton_forward.1} parent=0 // pred_check_branch
    %16 = sbr.rel (0) target = $region13
  $region12: #{aton_forward.1} parent=0 // pred_region
    _
  $region13: #{aton_forward.1} parent=0 // pred_fallthru
    _
  // Predicated region
  $region14: #{aton_forward.1} parent=0 // pred_check
    _
  $region15: #{aton_forward.1} parent=0 // pred_check_branch
    %18 = sbr.rel (0) target = $region17
  $region16: #{aton_forward.1} parent=0 // pred_region
    _
  $region17: #{aton_forward.1} parent=0 // pred_fallthru
    _
  // Predicated region
  $region18: #{aton_forward.1} parent=0 // pred_check
    _
  $region19: #{aton_forward.1} parent=0 // pred_check_branch
    %20 = sbr.rel (0) target = $region21
  $region20: #{aton_forward.1} parent=0 // pred_region
    _
  $region21: #{aton_forward.1} parent=0 // pred_fallthru
    _
  // Predicated region
  $region22: #{aton_forward.1} parent=0 // pred_check
    _
  $region23: #{aton_forward.1} parent=0 // pred_check_branch
    %22 = sbr.rel (0) target = $region25
  $region24: #{aton_forward.1} parent=0 // pred_region
    _
  $region25: #{aton_forward.1} parent=0 // pred_fallthru
    _
  %v23 = vld [vmem:[%s0] sm:$0xff]
  %v24 = vld [vmem:[%s0 + $0x8] sm:$0xff]
  %v25 = vld [vmem:[%s0 + $0x10] sm:$0xff]
  %v26 = vld [vmem:[%s0 + $0x18] sm:$0xff]
  %v27 = vld [vmem:[%s1] sm:$0xff]
  %v28 = vld [vmem:[%s1 + $0x8] sm:$0xff]
  %v29 = vld [vmem:[%s1 + $0x10] sm:$0xff]
  %v30 = vld [vmem:[%s1 + $0x18] sm:$0xff]
  %vm31 = vcmask 261120
  %v33 = vsel %vm31, %v23, 0
  %v36 = vsel %vm31, %v24, 0
  %v39 = vsel %vm31, %v25, 0
  %v42 = vsel %vm31, %v26, 0
  %44 = vmatpush.msra.mxu0 0.0
  %45 = vmatpush.msra.mxu0 0.0
  %46 = vmatpush.msra.mxu0 0.0
  %47 = vmatpush.msra.mxu0 0.0
  %48 = vmatpush.msra.mxu0 0.0
  %49 = vmatpush.msra.mxu0 0.0
  %50 = vmatpush.msra.mxu0 0.0
  %51 = vmatpush.msra.mxu0 0.0
  %52 = vmatpush.msra.mxu0 0.0
  %53 = vmatpush.msra.mxu0 0.0
  %54 = vmatpush.msra.mxu0 0.0
  %55 = vmatpush.msra.mxu0 0.0
  %56 = vmatpush.msra.mxu0 %v30
  %57 = vmatpush.msra.mxu0 %v29
  %58 = vmatpush.msra.mxu0 %v28
  %59 = vmatpush.msra.mxu0 %v27
  %60 = vmatmul.f32.gmra.mxu0 %v33
  %v61 = vpop.f32.mrf.mxu0
  %v62 = vadd.f32 0.0, %v61
  %63 = vmatmul.f32.gmra.mxu0 %v36
  %v64 = vpop.f32.mrf.mxu0
  %v65 = vadd.f32 0.0, %v64
  %66 = vmatmul.f32.gmra.mxu0 %v39
  %v67 = vpop.f32.mrf.mxu0
  %v68 = vadd.f32 0.0, %v67
  %69 = vmatmul.f32.gmra.mxu0 %v42
  %v70 = vpop.f32.mrf.mxu0
  %v71 = vadd.f32 0.0, %v70
  %72 = vdwg.mxu0
  %74 = vrot.lane.b32.xlu0 %v65, 16
  %v75 = vpop.permute.xlu0 %74
  %78 = vrot.lane.b32.xlu0 %v68, 32
  %v79 = vpop.permute.xlu0 %78
  %82 = vrot.lane.b32.xlu0 %v71, 48
  %v83 = vpop.permute.xlu0 %82
  %vm85 = vcmask 130048
  %v86 = vsel %vm85, %v62, %v75
  %v87 = vsel %vm31, %v86, %v79
  %vm88 = vcmask 392192
  %v89 = vsel %vm88, %v87, %v83
  %v90 = vld [vmem:[%s2] sm:$0xff]
  %v91 = vld [vmem:[%s2 + $0x8] sm:$0xff]
  %v92 = vld [vmem:[%s2 + $0x10] sm:$0xff]
  %v93 = vld [vmem:[%s2 + $0x18] sm:$0xff]
  %v94 = vld [vmem:[%s2 + $0x20] sm:$0xff]
  %v95 = vld [vmem:[%s2 + $0x28] sm:$0xff]
  %v96 = vld [vmem:[%s2 + $0x30] sm:$0xff]
  %v97 = vld [vmem:[%s2 + $0x38] sm:$0xff]
  %v98 = vld [vmem:[%s3] sm:$0x1]
  %v100 = vperm.slane %v98, 0
  %vm102 = vcmask 523264
  %v104 = vsel %vm102, %v89, 0
  %106 = vmatpush.msra.mxu0 0.0
  %107 = vmatpush.msra.mxu0 0.0
  %108 = vmatpush.msra.mxu0 0.0
  %109 = vmatpush.msra.mxu0 0.0
  %110 = vmatpush.msra.mxu0 0.0
  %111 = vmatpush.msra.mxu0 0.0
  %112 = vmatpush.msra.mxu0 0.0
  %113 = vmatpush.msra.mxu0 0.0
  %114 = vmatpush.msra.mxu0 %v97
  %115 = vmatpush.msra.mxu0 %v96
  %116 = vmatpush.msra.mxu0 %v95
  %117 = vmatpush.msra.mxu0 %v94
  %118 = vmatpush.msra.mxu0 %v93
  %119 = vmatpush.msra.mxu0 %v92
  %120 = vmatpush.msra.mxu0 %v91
  %121 = vmatpush.msra.mxu0 %v90
  %122 = vmatmul.f32.gmra.mxu0 %v104
  %v123 = vpop.f32.mrf.mxu0
  %v124 = vadd.f32 %v100, %v123
  %125 = vdwg.mxu0
  %v126 = vmax.f32 %v124, 0.0
  %v127 = vld [vmem:[%s4] sm:$0xff]
  %v128 = vld [vmem:[%s4 + $0x8] sm:$0xff]
  %v129 = vld [vmem:[%s4 + $0x10] sm:$0xff]
  %v130 = vld [vmem:[%s4 + $0x18] sm:$0xff]
  %v131 = vld [vmem:[%s5] sm:$0x1]
  %v133 = vperm.slane %v131, 0
  %v136 = vsel %vm31, %v126, 0
  %138 = vmatpush.msra.mxu0 0.0
  %139 = vmatpush.msra.mxu0 0.0
  %140 = vmatpush.msra.mxu0 0.0
  %141 = vmatpush.msra.mxu0 0.0
  %142 = vmatpush.msra.mxu0 0.0
  %143 = vmatpush.msra.mxu0 0.0
  %144 = vmatpush.msra.mxu0 0.0
  %145 = vmatpush.msra.mxu0 0.0
  %146 = vmatpush.msra.mxu0 0.0
  %147 = vmatpush.msra.mxu0 0.0
  %148 = vmatpush.msra.mxu0 0.0
  %149 = vmatpush.msra.mxu0 0.0
  %150 = vmatpush.msra.mxu0 %v130
  %151 = vmatpush.msra.mxu0 %v129
  %152 = vmatpush.msra.mxu0 %v128
  %153 = vmatpush.msra.mxu0 %v127
  %154 = vmatmul.f32.gmra.mxu0 %v136
  %v155 = vpop.f32.mrf.mxu0
  %v156 = vadd.f32 %v133, %v155
  %157 = vdwg.mxu0
  %v158 = vsel %vm85, %v156, -inf
  %159 = vmax.xlane.f32.xlu0 %v158
  %v160 = vpop.xlane.xlu0 %159
  %v161 = vsub.f32 %v156, %v160
  %v162 = vmul.f32 %v161, 1.442695
  %v163 = vpow.pop %v162
  %v164 = vsel %vm85, %v163, 0.0
  %165 = vadd.xlane.f32.xlu0 %v164
  %v166 = vpop.xlane.xlu0 %165
  %v167 = vrcp.pop %v166
  %v168 = vmul.f32 %v166, %v167
  %v169 = vsub.f32 1.0, %v168
  %v170 = vmul.f32 %v167, %v169
  %v171 = vadd.f32 %v167, %v170
  %vm172 = vweird.f32 %v166
  %vm173 = vweird.f32 %v167
  %vm174 = vmor %vm172, %vm173
  %v175 = vsel %vm174, %v167, %v171
  %v176 = vand.u32 2147483647, %v166
  %vm177 = vcmp.eq.f32.partialorder %v176, 8.507059e+37
  %v178 = vand.u32 %v166, 2147483648
  %v179 = vor.u32 1.1754944e-38, %v178
  %v180 = vsel %vm177, %v179, %v175
  %v181 = vmul.f32 %v163, %v180
  %v182 = vsub.f32 1.0, %v181
  %v183 = vmul.f32 %v182, %v62
  %v184 = vmul.f32 %v182, %v65
  %v185 = vsub.f32 %v183, %v184
  %v186 = vadd.f32 %v185, 1e-06
  %v187 = vmul.f32 %v186, %v186
  %v188 = vsel %vm85, %v187, 0.0
  %189 = vadd.xlane.f32.xlu0 %v188
  %v190 = vpop.xlane.xlu0 %189
  %v191 = vrsqrt.pop %v190
  %v192 = vmul.f32 %v191, %v190
  %v193 = vmul.f32 %v192, %v191
  %v194 = vmul.f32 0.5, %v193
  %v195 = vsub.f32 1.5, %v194
  %v196 = vmul.f32 %v191, %v195
  %v197 = vmul.f32 %v190, %v196
  %vm198 = vcmp.eq.f32.partialorder %v190, inf
  %v199 = vsel %vm198, %v190, %v197
  %vm200 = vcmp.eq.f32.partialorder %v190, 0.0
  %v201 = vand.u32 %v190, 2147483648
  %v202 = vsel %vm200, %v201, %v199
  %v203 = vmul.f32 %v182, %v68
  %v204 = vsub.f32 %v203, %v184
  %v205 = vadd.f32 %v204, 1e-06
  %v206 = vmul.f32 %v205, %v205
  %v207 = vsel %vm85, %v206, 0.0
  %208 = vadd.xlane.f32.xlu0 %v207
  %v209 = vpop.xlane.xlu0 %208
  %v210 = vrsqrt.pop %v209
  %v211 = vmul.f32 %v210, %v209
  %v212 = vmul.f32 %v211, %v210
  %v213 = vmul.f32 0.5, %v212
  %v214 = vsub.f32 1.5, %v213
  %v215 = vmul.f32 %v210, %v214
  %v216 = vmul.f32 %v209, %v215
  %vm217 = vcmp.eq.f32.partialorder %v209, inf
  %v218 = vsel %vm217, %v209, %v216
  %vm219 = vcmp.eq.f32.partialorder %v209, 0.0
  %v220 = vand.u32 %v209, 2147483648
  %v221 = vsel %vm219, %v220, %v218
  %v222 = vmul.f32 %v182, %v71
  %v223 = vsub.f32 %v183, %v222
  %v224 = vadd.f32 %v223, 1e-06
  %v225 = vmul.f32 %v224, %v224
  %v226 = vsel %vm85, %v225, 0.0
  %227 = vadd.xlane.f32.xlu0 %v226
  %v228 = vpop.xlane.xlu0 %227
  %v229 = vrsqrt.pop %v228
  %v230 = vmul.f32 %v229, %v228
  %v231 = vmul.f32 %v230, %v229
  %v232 = vmul.f32 0.5, %v231
  %v233 = vsub.f32 1.5, %v232
  %v234 = vmul.f32 %v229, %v233
  %v235 = vmul.f32 %v228, %v234
  %vm236 = vcmp.eq.f32.partialorder %v228, inf
  %v237 = vsel %vm236, %v228, %v235
  %vm238 = vcmp.eq.f32.partialorder %v228, 0.0
  %v239 = vand.u32 %v228, 2147483648
  %v240 = vsel %vm238, %v239, %v237
  %v241 = vsub.f32 %v202, %v221
  %v242 = vand.u32 2147483647, %v241
  %v243 = vsub.f32 %v202, %v240
  %v244 = vand.u32 2147483647, %v243
  %v245 = vadd.f32 %v242, %v244
  %v246 = vsub.f32 %v240, %v221
  %v247 = vand.u32 2147483647, %v246
  %v248 = vadd.f32 %v245, %v247
  %v249 = vmul.f32 %v65, %v181
  %v250 = vmul.f32 %v68, %v181
  %v251 = vmul.f32 %v62, %v181
  %v252 = vmul.f32 %v71, %v181
  %254 = vrot.lane.b32.xlu0 %v250, 16
  %v255 = vpop.permute.xlu0 %254
  %258 = vrot.lane.b32.xlu0 %v251, 32
  %v259 = vpop.permute.xlu0 %258
  %262 = vrot.lane.b32.xlu0 %v252, 48
  %v263 = vpop.permute.xlu0 %262
  %266 = vrot.lane.b32.xlu0 %v181, 64
  %v267 = vpop.permute.xlu0 %266
  %v269 = vsel %vm85, %v249, %v255
  %v270 = vsel %vm31, %v269, %v259
  %v271 = vsel %vm88, %v270, %v263
  %v272 = vsel %vm102, %v271, %v267
  %vm273 = vcmask 654336
  %v274 = vsel %vm273, %v272, %v248
  %vm275 = vcmask 785408
  %276 = vst.msk [vmem:[%s6] sm:$0xff] %vm275, %v274
  // Predicated region
  $region26: #{aton_forward.1} parent=0 // pred_check
    _
  $region27: #{aton_forward.1} parent=0 // pred_check_branch
    %278 = sbr.rel (0) target = $region29
  $region28: #{aton_forward.1} parent=0 // pred_region
    _
  $region29: #{aton_forward.1} parent=0 // pred_fallthru
    _
  // Predicated region
  $region30: #{aton_forward.1} parent=0 // pred_check
    _
  $region31: #{aton_forward.1} parent=0 // pred_check_branch
    %280 = sbr.rel (0) target = $region33
  $region32: #{aton_forward.1} parent=0 // pred_region
    _
  $region33: #{aton_forward.1} parent=0 // pred_fallthru
    _

</llo_original>
